<compile_context>
chip_gen: v7x
topology: tpu7x:2x2x1
jax: 0.10.0
libtpu: 0.0.40
codegen_flags: <defaults>
</compile_context>

<pallas_src>
import functools

import jax
import jax.numpy as jnp
from jax.experimental import pallas as pl
from jax.experimental.pallas import tpu as pltpu


def _round_up(x, m):
    return (x + m - 1) // m * m


def _cdiv(a, b):
    return -(-a // b)


# ----------------------------------------------------------------------------
# In-kernel math
# ----------------------------------------------------------------------------
def _focal_tile(x, t, lw, a, g, *, gamma_is_two):
    """Elementwise weighted focal loss on f32 tiles (VPU/EUP work only)."""
    relu_x = jnp.maximum(x, 0.0)
    e = jnp.exp(-jnp.abs(x))                       # EUP
    bce = relu_x - x * t + jnp.log1p(e)            # stable BCE-with-logits >= 0
    pt = jnp.exp(-bce)                             # EUP (3 EUP ops / element)
    omp = 1.0 - pt
    if gamma_is_two:                               # default gamma == 2.0
        focal_w = omp * omp                        # pure VPU, no pow()
    else:
        pw = jnp.power(omp, g)
        # match torch pow at the edge: 0**(+g) == 0, 0**0 == 1; guards the
        # exp(g*log(0)) NaN path.  (0**(-g) -> 1 here vs torch inf; negligible.)
        focal_w = jnp.where(omp > 0.0, pw, jnp.where(g > 0.0, 0.0, 1.0))
    wfl = focal_w * bce
    wfl = wfl * (0.25 if a is None else a)         # alpha default folded in
    if lw is not None:
        wfl = wfl * lw
    return wfl


def _unpack(refs, *, has_lw, alpha_kind, gamma_kind):
    it = iter(refs)
    x = next(it)[...].astype(jnp.float32)
    t = next(it)[...].astype(jnp.float32)
    lw = next(it)[...].astype(jnp.float32) if has_lw else None
    a = next(it)[...].astype(jnp.float32) if alpha_kind != "const" else None
    g = next(it)[...].astype(jnp.float32) if gamma_kind != "two" else None
    return x, t, lw, a, g


def _focal_none_kernel(*refs, has_lw, alpha_kind, gamma_kind):
    out_ref = refs[-1]
    x, t, lw, a, g = _unpack(refs[:-1], has_lw=has_lw, alpha_kind=alpha_kind,
                             gamma_kind=gamma_kind)
    wfl = _focal_tile(x, t, lw, a, g, gamma_is_two=(gamma_kind == "two"))
    out_ref[...] = wfl.astype(out_ref.dtype)       # OOB stores dropped by Pallas


def _focal_partial_kernel(*refs, has_lw, alpha_kind, gamma_kind,
                          valid_rows, tile_b):
    """Each grid block writes a lane-dense (1, 1, tile_c) per-lane partial sum.

    Out-of-bounds column lanes are dropped on store; ragged row blocks are
    masked here (garbage HBM rows must not pollute the sum).
    """
    out_ref = refs[-1]
    x, t, lw, a, g = _unpack(refs[:-1], has_lw=has_lw, alpha_kind=alpha_kind,
                             gamma_kind=gamma_kind)
    wfl = _focal_tile(x, t, lw, a, g, gamma_is_two=(gamma_kind == "two"))
    if valid_rows is not None:                     # static flag: B % tile_b != 0
        row = (pl.program_id(0) * tile_b
               + jax.lax.broadcasted_iota(jnp.int32, wfl.shape, 0))
        wfl = jnp.where(row < valid_rows, wfl, 0.0)
    out_ref[...] = jnp.sum(wfl, axis=0, keepdims=True)[None]


# ----------------------------------------------------------------------------
# Wrapper
# ----------------------------------------------------------------------------
def language_aware_focal_loss(inputs, targets, lang_weights=None, alpha=None,
                              gamma=None, reduction="mean"):
    inputs = jnp.asarray(inputs)
    targets = jnp.asarray(targets)
    B, C = inputs.shape
    f32 = jnp.float32

    has_lw = lang_weights is not None
    lw_kind = None
    if has_lw:
        lang_weights = jnp.asarray(lang_weights)
        lw_kind = "row" if lang_weights.ndim == 1 else "full"

    if alpha is None:
        alpha_kind = "const"                       # 0.25, never streamed
    else:
        alpha = jnp.asarray(alpha, f32)
        if alpha.ndim == 0:
            alpha = jnp.broadcast_to(alpha, (C,))
        alpha_kind = "full" if alpha.ndim == 2 else "row"
    if gamma is None:
        gamma_kind = "two"                         # (1-pt)**2, no pow()
    else:
        gamma = jnp.asarray(gamma, f32)
        if gamma.ndim == 0:
            gamma = jnp.broadcast_to(gamma, (C,))
        gamma_kind = "full" if gamma.ndim == 2 else "row"

    # ---- operands in canonical kernel order (no padding, native dtypes) ----
    ops = [(inputs, "full"), (targets, "full")]
    if has_lw:
        ops.append((lang_weights.reshape(1, C) if lw_kind == "row"
                    else lang_weights, lw_kind))
    if alpha_kind == "full":
        ops.append((alpha, "full"))
    elif alpha_kind == "row":
        ops.append((alpha.reshape(1, C), "row"))
    if gamma_kind == "full":
        ops.append((gamma, "full"))
    elif gamma_kind == "row":
        ops.append((gamma.reshape(1, C), "row"))

    out_dtype = inputs.dtype if jnp.issubdtype(inputs.dtype, jnp.floating) else f32

    # ---- VMEM-footprint-aware tiling ----
    # Per-element bytes: each streamed [B,C] operand double-buffered in its
    # native dtype, ~7 tile-sized f32 temporaries live in the body, plus the
    # double-buffered output tile on the 'none' path.
    per_elem = sum(2 * jnp.dtype(a.dtype).itemsize for a, k in ops if k == "full")
    per_elem += 7 * 4
    if reduction == "none":
        per_elem += 2 * jnp.dtype(out_dtype).itemsize

    try:  # generation-aware headroom (v7x: 64 MiB VMEM vs 128 MiB v5e/v6e)
        vmem_cap = int(getattr(pltpu.get_tpu_info(), "vmem_capacity_bytes",
                               64 * 1024 * 1024))
    except Exception:
        vmem_cap = 64 * 1024 * 1024
    vmem_limit = 32 * 1024 * 1024                  # safe on all generations
    tile_budget = (20 if vmem_cap >= 128 * 1024 * 1024 else 14) * 1024 * 1024
    max_tile_elems = max(8 * 128, tile_budget // per_elem)

    # Prefer full-width (one contiguous DMA per row-block) tiles; fall back to
    # column tiling only when even an 8-row full-width tile exceeds the budget.
    if 8 * C <= max_tile_elems:
        tile_c = C
        tile_b = max(8, min(1024, (max_tile_elems // C) // 8 * 8))
    else:
        tile_c = max(128, (max_tile_elems // 8) // 128 * 128)
        tile_b = 8
    grid_c = _cdiv(C, tile_c)

    if tile_b >= B:
        if grid_c == 1 and B > 8:
            # keep >= 2 grid steps: both v7x TensorCores get work and the
            # double-buffered DMA pipeline stays active everywhere.
            tile_b = _round_up(_cdiv(B, 2), 8)
        else:
            tile_b = B                             # block == full dim, no mask
    grid_b = _cdiv(B, tile_b)
    ragged_rows = (B % tile_b) != 0

    full_spec = pl.BlockSpec((tile_b, tile_c), lambda bi, ci: (bi, ci))
    row_spec = pl.BlockSpec((1, tile_c), lambda bi, ci: (0, ci))
    operands = [a for a, _ in ops]
    in_specs = [full_spec if k == "full" else row_spec for _, k in ops]

    cparams = pltpu.CompilerParams(
        dimension_semantics=("parallel", "parallel"),
        vmem_limit_bytes=vmem_limit)

    if reduction == "none":
        kern = functools.partial(
            _focal_none_kernel, has_lw=has_lw, alpha_kind=alpha_kind,
            gamma_kind=gamma_kind)
        return pl.pallas_call(
            kern,
            out_shape=jax.ShapeDtypeStruct((B, C), out_dtype),
            grid=(grid_b, grid_c),
            in_specs=in_specs,
            out_specs=full_spec,
            compiler_params=cparams,
        )(*operands)

    if reduction not in ("mean", "sum"):
        raise ValueError(f"unknown reduction: {reduction}")

    kern = functools.partial(
        _focal_partial_kernel, has_lw=has_lw, alpha_kind=alpha_kind,
        gamma_kind=gamma_kind,
        valid_rows=(B if ragged_rows else None), tile_b=tile_b)
    partials = pl.pallas_call(
        kern,
        out_shape=jax.ShapeDtypeStruct((grid_b, 1, C), f32),
        grid=(grid_b, grid_c),
        in_specs=in_specs,
        out_specs=pl.BlockSpec((1, 1, tile_c), lambda bi, ci: (bi, 0, ci)),
        compiler_params=cparams,
    )(*operands)
    total = jnp.sum(partials)                      # tiny final fold in JAX
    if reduction == "mean":
        total = total / (B * C)
    return total


# ----------------------------------------------------------------------------
# Pure-JAX reference (mirrors the PyTorch forward exactly)
# ----------------------------------------------------------------------------
def _reference(inputs, targets, lang_weights=None, alpha=None, gamma=None,
               reduction="mean"):
    inputs = inputs.astype(jnp.float32)
    targets = targets.astype(jnp.float32)
    B, C = inputs.shape
    if alpha is None:
        alpha = jnp.full_like(inputs, 0.25)
    else:
        alpha = jnp.asarray(alpha, jnp.float32)
    if gamma is None:
        gamma = jnp.full_like(inputs, 2.0)
    else:
        gamma = jnp.asarray(gamma, jnp.float32)
    if alpha.ndim == 1:
        alpha = jnp.broadcast_to(alpha[None, :], (B, C))
    if gamma.ndim == 1:
        gamma = jnp.broadcast_to(gamma[None, :], (B, C))
    bce = (jnp.maximum(inputs, 0.0) - inputs * targets
           + jnp.log1p(jnp.exp(-jnp.abs(inputs))))
    pt = jnp.exp(-bce)
    wfl = alpha * jnp.power(1.0 - pt, gamma) * bce
    if lang_weights is not None:
        wfl = wfl * lang_weights
    if reduction == "mean":
        return wfl.mean()
    if reduction == "sum":
        return wfl.sum()
    return wfl


# ----------------------------------------------------------------------------
# Demo
# ----------------------------------------------------------------------------
if __name__ == "__main__":
    key = jax.random.PRNGKey(0)
    k1, k2, k3, k4, k5 = jax.random.split(key, 5)

    B, C = 16, 128  # [batch_size, num_classes]
    inputs = jax.random.normal(k1, (B, C), jnp.float32)
    targets = jax.random.bernoulli(k2, 0.3, (B, C)).astype(jnp.float32)
    lang_weights = jax.random.uniform(k3, (B, C), jnp.float32, 0.5, 1.5)
    alpha = jax.random.uniform(k4, (C,), jnp.float32, 0.1, 0.9)   # per-class
    gamma = jax.random.uniform(k5, (C,), jnp.float32, 1.0, 3.0)   # per-class

    # 1) mean reduction, all optional args
    out = jax.block_until_ready(language_aware_focal_loss(
        inputs, targets, lang_weights, alpha, gamma, reduction="mean"))
    ref = _reference(inputs, targets, lang_weights, alpha, gamma, "mean")
    assert jnp.allclose(out, ref, rtol=1e-5, atol=1e-6), (out, ref)

    # 2) module defaults (alpha=None -> 0.25, gamma=None -> 2, no lang_weights)
    out2 = jax.block_until_ready(language_aware_focal_loss(
        inputs, targets, reduction="mean"))
    ref2 = _reference(inputs, targets, None, None, None, "mean")
    assert jnp.allclose(out2, ref2, rtol=1e-5, atol=1e-6), (out2, ref2)

    # 3) 'none' reduction (per-element output)
    out3 = jax.block_until_ready(language_aware_focal_loss(
        inputs, targets, lang_weights, alpha, gamma, reduction="none"))
    ref3 = _reference(inputs, targets, lang_weights, alpha, gamma, "none")
    assert out3.shape == (B, C)
    assert jnp.allclose(out3, ref3, rtol=1e-5, atol=1e-5)

    # 4) ragged batch (B not a multiple of the row tile) -> in-kernel row mask
    Br = 10
    out4 = jax.block_until_ready(language_aware_focal_loss(
        inputs[:Br], targets[:Br], lang_weights[:Br], alpha, gamma,
        reduction="sum"))
    ref4 = _reference(inputs[:Br], targets[:Br], lang_weights[:Br], alpha,
                      gamma, "sum")
    assert jnp.allclose(out4, ref4, rtol=1e-5, atol=1e-5), (out4, ref4)

    print("KERNEL_OK")
</pallas_src>

<mosaic_0001>
module attributes {stable_mosaic.version = 11 : i64} {
  func.func @_focal_partial_kernel(%arg0: i32, %arg1: i32, %arg2: memref<8x128xf32, #tpu.memory_space<vmem>>, %arg3: memref<8x128xf32, #tpu.memory_space<vmem>>, %arg4: memref<8x128xf32, #tpu.memory_space<vmem>>, %arg5: memref<1x128xf32, #tpu.memory_space<vmem>>, %arg6: memref<1x128xf32, #tpu.memory_space<vmem>>, %arg7: memref<1x1x128xf32, #tpu.memory_space<vmem>>) attributes {dimension_semantics = [#tpu.dimension_semantics<parallel>, #tpu.dimension_semantics<parallel>], iteration_bounds = array<i64: 2, 1>, scalar_prefetch = 0 : i64, scratch_operands = 0 : i64, tpu.core_type = #tpu.core_type<tc>, window_params = [{transform_indices = @transform_0, window_bounds = array<i64: 8, 128>}, {transform_indices = @transform_1, window_bounds = array<i64: 8, 128>}, {transform_indices = @transform_2, window_bounds = array<i64: 8, 128>}, {transform_indices = @transform_3, window_bounds = array<i64: 1, 128>}, {transform_indices = @transform_4, window_bounds = array<i64: 1, 128>}, {transform_indices = @transform_5, window_bounds = array<i64: 1, 1, 128>}]} {
    %c0 = arith.constant 0 : index
    %c0_0 = arith.constant 0 : index
    %0 = vector.load %arg2[%c0, %c0_0] : memref<8x128xf32, #tpu.memory_space<vmem>>, vector<8x128xf32>
    %c0_1 = arith.constant 0 : index
    %c0_2 = arith.constant 0 : index
    %1 = vector.load %arg3[%c0_1, %c0_2] : memref<8x128xf32, #tpu.memory_space<vmem>>, vector<8x128xf32>
    %c0_3 = arith.constant 0 : index
    %c0_4 = arith.constant 0 : index
    %2 = vector.load %arg4[%c0_3, %c0_4] : memref<8x128xf32, #tpu.memory_space<vmem>>, vector<8x128xf32>
    %c0_5 = arith.constant 0 : index
    %c0_6 = arith.constant 0 : index
    %3 = vector.load %arg5[%c0_5, %c0_6] : memref<1x128xf32, #tpu.memory_space<vmem>>, vector<1x128xf32>
    %c0_7 = arith.constant 0 : index
    %c0_8 = arith.constant 0 : index
    %4 = vector.load %arg6[%c0_7, %c0_8] : memref<1x128xf32, #tpu.memory_space<vmem>>, vector<1x128xf32>
    %cst = arith.constant 0.000000e+00 : f32
    %5 = vector.broadcast %cst : f32 to vector<8x128xf32>
    %6 = arith.maximumf %0, %5 : vector<8x128xf32>
    %7 = math.absf %0 : vector<8x128xf32>
    %cst_9 = arith.constant 0.000000e+00 : f32
    %8 = vector.broadcast %cst_9 : f32 to vector<8x128xf32>
    %9 = arith.subf %8, %7 : vector<8x128xf32>
    %10 = math.exp %9 : vector<8x128xf32>
    %11 = arith.mulf %0, %1 : vector<8x128xf32>
    %12 = arith.subf %6, %11 : vector<8x128xf32>
    %13 = math.log1p %10 : vector<8x128xf32>
    %14 = arith.addf %12, %13 : vector<8x128xf32>
    %cst_10 = arith.constant 0.000000e+00 : f32
    %15 = vector.broadcast %cst_10 : f32 to vector<8x128xf32>
    %16 = arith.subf %15, %14 : vector<8x128xf32>
    %17 = math.exp %16 : vector<8x128xf32>
    %cst_11 = arith.constant 1.000000e+00 : f32
    %18 = vector.broadcast %cst_11 : f32 to vector<8x128xf32>
    %19 = arith.subf %18, %17 : vector<8x128xf32>
    %20 = vector.broadcast %4 : vector<1x128xf32> to vector<8x128xf32>
    %21 = math.powf %19, %20 : vector<8x128xf32>
    %cst_12 = arith.constant 0.000000e+00 : f32
    %22 = vector.broadcast %cst_12 : f32 to vector<8x128xf32>
    %23 = arith.cmpf ogt, %19, %22 : vector<8x128xf32>
    %cst_13 = arith.constant 0.000000e+00 : f32
    %24 = vector.broadcast %cst_13 : f32 to vector<1x128xf32>
    %25 = arith.cmpf ogt, %4, %24 : vector<1x128xf32>
    %cst_14 = arith.constant 0.000000e+00 : f32
    %cst_15 = arith.constant 1.000000e+00 : f32
    %26 = vector.broadcast %cst_14 : f32 to vector<1x128xf32>
    %27 = vector.broadcast %cst_15 : f32 to vector<1x128xf32>
    %28 = arith.select %25, %26, %27 : vector<1x128xi1>, vector<1x128xf32>
    %29 = vector.shape_cast %28 : vector<1x128xf32> to vector<1x128xf32>
    %30 = vector.broadcast %29 : vector<1x128xf32> to vector<8x128xf32>
    %31 = arith.select %23, %21, %30 : vector<8x128xi1>, vector<8x128xf32>
    %32 = arith.mulf %31, %14 : vector<8x128xf32>
    %33 = vector.broadcast %3 : vector<1x128xf32> to vector<8x128xf32>
    %34 = arith.mulf %32, %33 : vector<8x128xf32>
    %35 = arith.mulf %34, %2 : vector<8x128xf32>
    %cst_16 = arith.constant dense<0.000000e+00> : vector<128xf32>
    %36 = vector.multi_reduction <add>, %35, %cst_16 [0] : vector<8x128xf32> to vector<128xf32>
    %37 = vector.shape_cast %36 : vector<128xf32> to vector<1x128xf32>
    %38 = vector.shape_cast %37 : vector<1x128xf32> to vector<1x1x128xf32>
    %c0_17 = arith.constant 0 : index
    %c0_18 = arith.constant 0 : index
    %c0_19 = arith.constant 0 : index
    %39 = vector.load %arg7[%c0_17, %c0_18, %c0_19] : memref<1x1x128xf32, #tpu.memory_space<vmem>>, vector<1x1x128xf32>
    tpu.vector_store %arg7[%c0_17, %c0_18, %c0_19], %38 {strides = array<i32>} : memref<1x1x128xf32, #tpu.memory_space<vmem>>, vector<1x1x128xf32>,
    return
  }
  func.func @transform_0(%arg0: i32, %arg1: i32) -> (i32, i32) {
    %c0_i32 = arith.constant 0 : i32
    return %arg0, %arg1 : i32, i32
  }
  func.func @transform_1(%arg0: i32, %arg1: i32) -> (i32, i32) {
    %c0_i32 = arith.constant 0 : i32
    return %arg0, %arg1 : i32, i32
  }
  func.func @transform_2(%arg0: i32, %arg1: i32) -> (i32, i32) {
    %c0_i32 = arith.constant 0 : i32
    return %arg0, %arg1 : i32, i32
  }
  func.func @transform_3(%arg0: i32, %arg1: i32) -> (i32, i32) {
    %c0_i32 = arith.constant 0 : i32
    %c0_i32_0 = arith.constant 0 : i32
    return %c0_i32, %arg1 : i32, i32
  }
  func.func @transform_4(%arg0: i32, %arg1: i32) -> (i32, i32) {
    %c0_i32 = arith.constant 0 : i32
    %c0_i32_0 = arith.constant 0 : i32
    return %c0_i32, %arg1 : i32, i32
  }
  func.func @transform_5(%arg0: i32, %arg1: i32) -> (i32, i32, i32) {
    %c0_i32 = arith.constant 0 : i32
    %c0_i32_0 = arith.constant 0 : i32
    return %arg0, %c0_i32, %arg1 : i32, i32, i32
  }
}

</mosaic_0001>

<llo_original>
// kernel: tpu_custom_call.1
$region0: #{tpu_custom_call.1}
  #allocation0 [shape = 'u32[]', space=smem, size = 0x4, offset = 0x4, fixed_abs, tag = 'smem constant byte address 0x4 - core index']
  #allocation1 [shape = 'u32[144,128]{1,0:T(1,128)}', space=vmem, size = 0x12000, scoped, tag = 'internal scratch']
  %s0 = inlined_call_operand.hbm [shape: f32[16,128], index: 0, kind: input, shape index: {}]
  %s1 = inlined_call_operand.hbm [shape: f32[16,128], index: 1, kind: input, shape index: {}]
  %s2 = inlined_call_operand.hbm [shape: f32[16,128], index: 2, kind: input, shape index: {}]
  %s3 = inlined_call_operand.vmem [shape: f32[1,128], index: 3, kind: input, shape index: {}]
  %s4 = inlined_call_operand.vmem [shape: f32[1,128], index: 4, kind: input, shape index: {}]
  %s5 = inlined_call_operand.hbm [shape: f32[2,1,128], index: 5, kind: output, shape index: {}]
  %s6 = sld [smem:[#allocation0]]
  $region65: #{tpu_custom_call.1} parent=0
    _
  %s8 = ssub.s32 1, %s6
  %s9 = scalar_select 0, %s8, %s6
  $region1: #{tpu_custom_call.1} parent=0
    #allocation2 [shape = 'u8[8192]{0}', space=vmem, size = 0x2000, scoped, tag = 'input window, operand 0']
    #allocation3 [shape = 's32[2]{0}', space=sflag, size = 0x8, scoped, tag = 'scoped memory for tpu_custom_call.1']
    #allocation4 [shape = 's32[2]{0}', space=sflag, size = 0x8, scoped, tag = 'scoped memory for tpu_custom_call.1']
    #allocation5 [shape = 'u8[8192]{0}', space=vmem, size = 0x2000, scoped, tag = 'input window, operand 1']
    #allocation6 [shape = 's32[2]{0}', space=sflag, size = 0x8, scoped, tag = 'scoped memory for tpu_custom_call.1']
    #allocation7 [shape = 'u8[8192]{0}', space=vmem, size = 0x2000, scoped, tag = 'input window, operand 2']
    #allocation8 [shape = 'u8[1024]{0}', space=vmem, size = 0x400, scoped, tag = 'output window, operand 0']
    %10 = vsyncpa [#allocation3], 0
    %s11 = scalar_lea.sflag [#allocation3], 1
    %12 = vsyncpa %s11, 0
    %13 = vsyncpa [#allocation6], 0
    %s14 = scalar_lea.sflag [#allocation6], 1
    %15 = vsyncpa %s14, 0
    %16 = vsyncpa [#allocation4], 0
    %s17 = scalar_lea.sflag [#allocation4], 1
    %18 = vsyncpa %s17, 0
    loop: start=0, step=1, limit=4
    $region2: #{tpu_custom_call.1} parent=1 // loop_pre_header
      _
    $region3: #{tpu_custom_call.1} parent=1 // loop_header
      %s20 = sphi 0, %s24
      %p21 = scmp.ge.s32.totalorder %s20, 4
      %s27 = sphi 0, %s39
      %s28 = sphi 0, %s35
      %s29 = sphi 0, %s27
      %s30 = sphi 0, %s28
      %s31 = sphi 0, %s29
      %s32 = sphi 0, %s30
      %s44 = sphi 0, %s46
      %s47 = sphi 0, %s44
      %s48 = sphi 0, %s47
      %s64 = sphi 0, %s48
      %s72 = sphi 0, %s74
      %s75 = sphi 0, %s72
      %s76 = sphi 0, %s75
      %s92 = sphi 0, %s76
      %s100 = sphi 0, %s102
      %s103 = sphi 0, %s100
      %s104 = sphi 0, %s103
      %s120 = sphi 0, %s104
      %s126 = sphi 0, %s128
      %s129 = sphi 0, %s126
      %s130 = sphi 0, %s129
      %s146 = sphi 0, %s130
      %s152 = sphi 0, %s154
      %s155 = sphi 0, %s152
      %s156 = sphi 0, %s155
      %s172 = sphi 0, %s156
      %s180 = sphi 0, %s182
      %s183 = sphi 0, %s180
      %s184 = sphi 0, %s183
      %s200 = sphi 0, %s184
    $region4: #{tpu_custom_call.1} parent=1 // loop_header_branch
      %23 = sbr.rel (%p21) target = $region8
    $region5: #{tpu_custom_call.1} parent=1 // loop_body
      %s25 = ssub.s32 %s20, 1
      %s26 = ssub.s32 %s20, 2
      %s33 = sadd.s32 1, %s28
      %p34 = scmp.ge.s32.totalorder %s33, 1
      %s35 = scalar_select %p34, 0, %s33
      %s36 = sadd.s32 1, %s27
      %s37 = scalar_select %p34, %s36, %s27
      %p38 = scmp.ge.s32.totalorder %s37, 2
      %s39 = scalar_select %p38, 0, %s37
      %s40 = ssub.s32 %s27, %s39
      %s41 = ssub.s32 %s28, %s35
      %s42 = sor.u32 %s40, %s41
      %p43 = scmp.eq.s32.totalorder %s42, 0
      %s45 = sadd.s32 %s44, 1
      %s46 = scalar_select %p43, %s44, %s45
      %p49 = pneg %p43
      %p50 = scmp.eq.s32.totalorder %s20, 1
      %p51 = por %p49, %p50
      %p52 = scmp.ne.s32.totalorder %s44, %s47
      %p53 = scmp.eq.s32.totalorder %s20, 0
      %p54 = por %p52, %p53
      %p55 = scmp.ne.s32.totalorder %s44, %s47
      %p56 = scmp.eq.s32.totalorder %s25, 1
      %p57 = por %p55, %p56
      %p58 = scmp.ne.s32.totalorder %s47, %s48
      %p59 = scmp.eq.s32.totalorder %s25, 0
      %p60 = por %p58, %p59
      %p61 = scmp.ne.s32.totalorder %s47, %s48
      %p62 = scmp.eq.s32.totalorder %s26, 1
      %p63 = por %p61, %p62
      %p65 = scmp.ne.s32.totalorder %s48, %s64
      %p66 = scmp.eq.s32.totalorder %s26, 0
      %p67 = por %p65, %p66
      %s68 = ssub.s32 %s27, %s39
      %s69 = ssub.s32 %s28, %s35
      %s70 = sor.u32 %s68, %s69
      %p71 = scmp.eq.s32.totalorder %s70, 0
      %s73 = sadd.s32 %s72, 1
      %s74 = scalar_select %p71, %s72, %s73
      %p77 = pneg %p71
      %p78 = scmp.eq.s32.totalorder %s20, 1
      %p79 = por %p77, %p78
      %p80 = scmp.ne.s32.totalorder %s72, %s75
      %p81 = scmp.eq.s32.totalorder %s20, 0
      %p82 = por %p80, %p81
      %p83 = scmp.ne.s32.totalorder %s72, %s75
      %p84 = scmp.eq.s32.totalorder %s25, 1
      %p85 = por %p83, %p84
      %p86 = scmp.ne.s32.totalorder %s75, %s76
      %p87 = scmp.eq.s32.totalorder %s25, 0
      %p88 = por %p86, %p87
      %p89 = scmp.ne.s32.totalorder %s75, %s76
      %p90 = scmp.eq.s32.totalorder %s26, 1
      %p91 = por %p89, %p90
      %p93 = scmp.ne.s32.totalorder %s76, %s92
      %p94 = scmp.eq.s32.totalorder %s26, 0
      %p95 = por %p93, %p94
      %s96 = ssub.s32 %s27, %s39
      %s97 = ssub.s32 %s28, %s35
      %s98 = sor.u32 %s96, %s97
      %p99 = scmp.eq.s32.totalorder %s98, 0
      %s101 = sadd.s32 %s100, 1
      %s102 = scalar_select %p99, %s100, %s101
      %p105 = pneg %p99
      %p106 = scmp.eq.s32.totalorder %s20, 1
      %p107 = por %p105, %p106
      %p108 = scmp.ne.s32.totalorder %s100, %s103
      %p109 = scmp.eq.s32.totalorder %s20, 0
      %p110 = por %p108, %p109
      %p111 = scmp.ne.s32.totalorder %s100, %s103
      %p112 = scmp.eq.s32.totalorder %s25, 1
      %p113 = por %p111, %p112
      %p114 = scmp.ne.s32.totalorder %s103, %s104
      %p115 = scmp.eq.s32.totalorder %s25, 0
      %p116 = por %p114, %p115
      %p117 = scmp.ne.s32.totalorder %s103, %s104
      %p118 = scmp.eq.s32.totalorder %s26, 1
      %p119 = por %p117, %p118
      %p121 = scmp.ne.s32.totalorder %s104, %s120
      %p122 = scmp.eq.s32.totalorder %s26, 0
      %p123 = por %p121, %p122
      %s124 = ssub.s32 %s28, %s35
      %p125 = scmp.eq.s32.totalorder %s124, 0
      %s127 = sadd.s32 %s126, 1
      %s128 = scalar_select %p125, %s126, %s127
      %p131 = pneg %p125
      %p132 = scmp.eq.s32.totalorder %s20, 1
      %p133 = por %p131, %p132
      %p134 = scmp.ne.s32.totalorder %s126, %s129
      %p135 = scmp.eq.s32.totalorder %s20, 0
      %p136 = por %p134, %p135
      %p137 = scmp.ne.s32.totalorder %s126, %s129
      %p138 = scmp.eq.s32.totalorder %s25, 1
      %p139 = por %p137, %p138
      %p140 = scmp.ne.s32.totalorder %s129, %s130
      %p141 = scmp.eq.s32.totalorder %s25, 0
      %p142 = por %p140, %p141
      %p143 = scmp.ne.s32.totalorder %s129, %s130
      %p144 = scmp.eq.s32.totalorder %s26, 1
      %p145 = por %p143, %p144
      %p147 = scmp.ne.s32.totalorder %s130, %s146
      %p148 = scmp.eq.s32.totalorder %s26, 0
      %p149 = por %p147, %p148
      %s150 = ssub.s32 %s28, %s35
      %p151 = scmp.eq.s32.totalorder %s150, 0
      %s153 = sadd.s32 %s152, 1
      %s154 = scalar_select %p151, %s152, %s153
      %p157 = pneg %p151
      %p158 = scmp.eq.s32.totalorder %s20, 1
      %p159 = por %p157, %p158
      %p160 = scmp.ne.s32.totalorder %s152, %s155
      %p161 = scmp.eq.s32.totalorder %s20, 0
      %p162 = por %p160, %p161
      %p163 = scmp.ne.s32.totalorder %s152, %s155
      %p164 = scmp.eq.s32.totalorder %s25, 1
      %p165 = por %p163, %p164
      %p166 = scmp.ne.s32.totalorder %s155, %s156
      %p167 = scmp.eq.s32.totalorder %s25, 0
      %p168 = por %p166, %p167
      %p169 = scmp.ne.s32.totalorder %s155, %s156
      %p170 = scmp.eq.s32.totalorder %s26, 1
      %p171 = por %p169, %p170
      %p173 = scmp.ne.s32.totalorder %s156, %s172
      %p174 = scmp.eq.s32.totalorder %s26, 0
      %p175 = por %p173, %p174
      %s176 = ssub.s32 %s27, %s39
      %s177 = ssub.s32 %s28, %s35
      %s178 = sor.u32 %s176, %s177
      %p179 = scmp.eq.s32.totalorder %s178, 0
      %s181 = sadd.s32 %s180, 1
      %s182 = scalar_select %p179, %s180, %s181
      %p185 = pneg %p179
      %p186 = scmp.eq.s32.totalorder %s20, 1
      %p187 = por %p185, %p186
      %p188 = scmp.ne.s32.totalorder %s180, %s183
      %p189 = scmp.eq.s32.totalorder %s20, 0
      %p190 = por %p188, %p189
      %p191 = scmp.ne.s32.totalorder %s180, %s183
      %p192 = scmp.eq.s32.totalorder %s25, 1
      %p193 = por %p191, %p192
      %p194 = scmp.ne.s32.totalorder %s183, %s184
      %p195 = scmp.eq.s32.totalorder %s25, 0
      %p196 = por %p194, %p195
      %p197 = scmp.ne.s32.totalorder %s183, %s184
      %p198 = scmp.eq.s32.totalorder %s26, 1
      %p199 = por %p197, %p198
      %p201 = scmp.ne.s32.totalorder %s184, %s200
      %p202 = scmp.eq.s32.totalorder %s26, 0
      %p203 = por %p201, %p202
      %p204 = scmp.le.s32.totalorder 1, %s20
      %p205 = scmp.lt.s32.totalorder %s20, 3
      %p206 = pnand %p204, %p205
      %p207 = pneg %p206
      // Predicated region
      $region9: #{tpu_custom_call.1} parent=5 // pred_check
        _
      $region10: #{tpu_custom_call.1} parent=5 // pred_check_branch
        %209 = sbr.rel (%p206) target = $region12
      $region11: #{tpu_custom_call.1} parent=5 // pred_region
        %s210 = ssub.s32 %s20, 1
        // Predicated region
        $region13: #{tpu_custom_call.1} parent=11 // pred_check
          %p211 = pneg %p142
        $region14: #{tpu_custom_call.1} parent=11 // pred_check_branch
          %213 = sbr.rel (%p211) target = $region16
        $region15: #{tpu_custom_call.1} parent=11 // pred_region
          %p214 = scmp.lt.s32.totalorder %s30, 0
          %s215 = scalar_select %p214, %s30, 0
          %s216 = scalar_lea.vmem %s3, %s215
        $region16: #{tpu_custom_call.1} parent=11 // pred_fallthru
          _
        // Predicated region
        $region17: #{tpu_custom_call.1} parent=11 // pred_check
          %p217 = pneg %p168
        $region18: #{tpu_custom_call.1} parent=11 // pred_check_branch
          %219 = sbr.rel (%p217) target = $region20
        $region19: #{tpu_custom_call.1} parent=11 // pred_region
          %p220 = scmp.lt.s32.totalorder %s30, 0
          %s221 = scalar_select %p220, %s30, 0
          %s222 = scalar_lea.vmem %s4, %s221
        $region20: #{tpu_custom_call.1} parent=11 // pred_fallthru
          _
      $region12: #{tpu_custom_call.1} parent=5 // pred_fallthru
        _
      %p223 = scmp.lt.s32.totalorder %s20, 2
      // Predicated region
      $region21: #{tpu_custom_call.1} parent=5 // pred_check
        %p224 = pneg %p223
      $region22: #{tpu_custom_call.1} parent=5 // pred_check_branch
        %226 = sbr.rel (%p224) target = $region24
      $region23: #{tpu_custom_call.1} parent=5 // pred_region
        // Predicated region
        $region25: #{tpu_custom_call.1} parent=23 // pred_check
          %p227 = pneg %p54
        $region26: #{tpu_custom_call.1} parent=23 // pred_check_branch
          %229 = sbr.rel (%p227) target = $region28
        $region27: #{tpu_custom_call.1} parent=23 // pred_region
          %s230 = sand.u32 %s44, 1
          %s231 = scalar_lea.sflag [#allocation3], %s230
          %s232 = sand.u32 %s44, 1
          %s233 = smul.addr %s232, 8
          %s234 = scalar_lea.vmem [#allocation2], %s233
          %s236 = ssub.s32 128, 128
          %237 = vsyncadd %s231, %s236
          %s238 = sadd.s32 %s28, %s27
          %s239 = smul.addr %s238, 128
          %s240 = scalar_lea.hbm %s0, %s239
          %s242 = sshll.u32 %s234, 4
          %s243 = int_to_ptr.vmem [resolvable:$true] %s242
          %245 = dma.hbm_to_vmem [thread:$0]  %s240, 128, %s243, %s231
        $region28: #{tpu_custom_call.1} parent=23 // pred_fallthru
          _
        // Predicated region
        $region29: #{tpu_custom_call.1} parent=23 // pred_check
          %p246 = pneg %p82
        $region30: #{tpu_custom_call.1} parent=23 // pred_check_branch
          %248 = sbr.rel (%p246) target = $region32
        $region31: #{tpu_custom_call.1} parent=23 // pred_region
          %s249 = sand.u32 %s20, 1
          %s250 = scalar_lea.sflag [#allocation6], %s249
          %s251 = sand.u32 %s72, 1
          %s252 = smul.addr %s251, 8
          %s253 = scalar_lea.vmem [#allocation5], %s252
          %s255 = ssub.s32 128, 128
          %256 = vsyncadd %s250, %s255
          %s257 = sadd.s32 %s28, %s27
          %s258 = smul.addr %s257, 128
          %s259 = scalar_lea.hbm %s1, %s258
          %s261 = sshll.u32 %s253, 4
          %s262 = int_to_ptr.vmem [resolvable:$true] %s261
          %264 = dma.hbm_to_vmem [thread:$0]  %s259, 128, %s262, %s250
        $region32: #{tpu_custom_call.1} parent=23 // pred_fallthru
          _
        // Predicated region
        $region33: #{tpu_custom_call.1} parent=23 // pred_check
          %p265 = pneg %p110
        $region34: #{tpu_custom_call.1} parent=23 // pred_check_branch
          %267 = sbr.rel (%p265) target = $region36
        $region35: #{tpu_custom_call.1} parent=23 // pred_region
          %s268 = sand.u32 %s20, 1
          %s269 = scalar_lea.sflag [#allocation6], %s268
          %s270 = sand.u32 %s100, 1
          %s271 = smul.addr %s270, 8
          %s272 = scalar_lea.vmem [#allocation7], %s271
          %s274 = ssub.s32 128, 128
          %275 = vsyncadd %s269, %s274
          %s276 = sadd.s32 %s28, %s27
          %s277 = smul.addr %s276, 128
          %s278 = scalar_lea.hbm %s2, %s277
          %s280 = sshll.u32 %s272, 4
          %s281 = int_to_ptr.vmem [resolvable:$true] %s280
          %283 = dma.hbm_to_vmem [thread:$0]  %s278, 128, %s281, %s269
        $region36: #{tpu_custom_call.1} parent=23 // pred_fallthru
          _
      $region24: #{tpu_custom_call.1} parent=5 // pred_fallthru
        _
      %p284 = scmp.le.s32.totalorder 1, %s20
      %p285 = scmp.lt.s32.totalorder %s20, 3
      %p286 = pnand %p284, %p285
      %p287 = pneg %p286
      // Predicated region
      $region37: #{tpu_custom_call.1} parent=5 // pred_check
        _
      $region38: #{tpu_custom_call.1} parent=5 // pred_check_branch
        %289 = sbr.rel (%p286) target = $region40
      $region39: #{tpu_custom_call.1} parent=5 // pred_region
        %s290 = ssub.s32 %s20, 1
        %s291 = sand.u32 %s47, 1
        %s292 = scalar_lea.sflag [#allocation3], %s291
        %s293 = sand.u32 %s47, 1
        %s294 = smul.addr %s293, 8
        %s295 = scalar_lea.vmem [#allocation2], %s294
        // Predicated region
        $region41: #{tpu_custom_call.1} parent=39 // pred_check
          %p296 = pneg %p60
        $region42: #{tpu_custom_call.1} parent=39 // pred_check_branch
          %298 = sbr.rel (%p296) target = $region44
        $region43: #{tpu_custom_call.1} parent=39 // pred_region
          %299 = dma.done %s292, 128
        $region44: #{tpu_custom_call.1} parent=39 // pred_fallthru
          _
        %s300 = sand.u32 %s25, 1
        %s301 = scalar_lea.sflag [#allocation6], %s300
        %s302 = sand.u32 %s75, 1
        %s303 = smul.addr %s302, 8
        %s304 = scalar_lea.vmem [#allocation5], %s303
        // Predicated region
        $region45: #{tpu_custom_call.1} parent=39 // pred_check
          %p305 = pneg %p88
        $region46: #{tpu_custom_call.1} parent=39 // pred_check_branch
          %307 = sbr.rel (%p305) target = $region48
        $region47: #{tpu_custom_call.1} parent=39 // pred_region
          %308 = dma.done %s301, 128
        $region48: #{tpu_custom_call.1} parent=39 // pred_fallthru
          _
        %s309 = sand.u32 %s25, 1
        %s310 = scalar_lea.sflag [#allocation6], %s309
        %s311 = sand.u32 %s103, 1
        %s312 = smul.addr %s311, 8
        %s313 = scalar_lea.vmem [#allocation7], %s312
        // Predicated region
        $region49: #{tpu_custom_call.1} parent=39 // pred_check
          %p314 = pneg %p116
        $region50: #{tpu_custom_call.1} parent=39 // pred_check_branch
          %316 = sbr.rel (%p314) target = $region52
        $region51: #{tpu_custom_call.1} parent=39 // pred_region
          %317 = dma.done %s310, 128
        $region52: #{tpu_custom_call.1} parent=39 // pred_fallthru
          _
        %s318 = sand.u32 %s47, 1
        %s319 = scalar_lea.sflag [#allocation3], %s318
        %s320 = sand.u32 %s47, 1
        %s321 = smul.addr %s320, 8
        %s322 = scalar_lea.vmem [#allocation2], %s321
        %p323 = pneg %p60
        %p324 = pneg %p57
        %s325 = sand.u32 %s25, 1
        %s326 = scalar_lea.sflag [#allocation6], %s325
        %s327 = sand.u32 %s75, 1
        %s328 = smul.addr %s327, 8
        %s329 = scalar_lea.vmem [#allocation5], %s328
        %p330 = pneg %p88
        %p331 = pneg %p85
        %s332 = sand.u32 %s25, 1
        %s333 = scalar_lea.sflag [#allocation6], %s332
        %s334 = sand.u32 %s103, 1
        %s335 = smul.addr %s334, 8
        %s336 = scalar_lea.vmem [#allocation7], %s335
        %p337 = pneg %p116
        %p338 = pneg %p113
        %p339 = scmp.lt.s32.totalorder %s30, 0
        %s340 = scalar_select %p339, %s30, 0
        %s341 = scalar_lea.vmem %s3, %s340
        %p342 = pneg %p142
        %p343 = pneg %p139
        %p344 = scmp.lt.s32.totalorder %s30, 0
        %s345 = scalar_select %p344, %s30, 0
        %s346 = scalar_lea.vmem %s4, %s345
        %p347 = pneg %p168
        %p348 = pneg %p165
        %p349 = pneg %p196
        %p350 = pneg %p193
        %s351 = sand.u32 %s183, 1
        %s352 = scalar_lea.sflag [#allocation4], %s351
        %s353 = sand.u32 %s183, 1
        %s354 = scalar_lea.vmem [#allocation8], %s353
        %p355 = scmp.lt.s32.totalorder %s30, 0
        %s356 = scalar_select %p355, %s30, 0
        %s357 = scalar_lea.vmem %s3, %s356
        %p358 = scmp.lt.s32.totalorder %s30, 0
        %s359 = scalar_select %p358, %s30, 0
        %s360 = scalar_lea.vmem %s4, %s359
        %v361 = vld [vmem:[%s295] sm:$0xff]
        %v362 = vld [vmem:[%s304] sm:$0xff]
        %v363 = vld [vmem:[%s313] sm:$0xff]
        %v364 = vld [vmem:[%s357] sm:$0x1]
        %v365 = vld [vmem:[%s360] sm:$0x1]
        %v366 = vmax.f32 %v361, 0.0
        %v367 = vand.u32 2147483647, %v361
        %v368 = vsub.f32 0.0, %v367
        %v369 = vmul.f32 %v368, 1.442695
        %v370 = vpow.pop %v369
        %v371 = vmul.f32 %v361, %v362
        %v372 = vsub.f32 %v366, %v371
        %v373 = vadd.f32 %v370, 1.0
        %v374 = vlog2.pop %v373
        %v375 = vmul.f32 %v374, 0.6931472
        %v376 = vmul.f32 -0.5, %v370
        %v377 = vadd.f32 %v376, 1.0
        %v378 = vmul.f32 %v377, %v370
        %v379 = vand.u32 2147483647, %v370
        %vm380 = vcmp.lt.f32.partialorder %v379, 0.0004427343
        %v381 = vsel %vm380, %v378, %v375
        %v382 = vadd.f32 %v372, %v381
        %v383 = vsub.f32 0.0, %v382
        %v384 = vmul.f32 %v383, 1.442695
        %v385 = vpow.pop %v384
        %v386 = vsub.f32 1.0, %v385
        %v388 = vlaneseq
        %v389 = vshrl.u32 %v388, 7
        %v390 = vsub.s32 0, %v389
        %v391 = vrot.slane %v365, %v390
        %v393 = vpow.f32 %v386, %v391
        %vm394 = vcmp.gt.f32.partialorder %v386, 0.0
        %vm395 = vcmp.gt.f32.partialorder %v365, 0.0
        %v396 = vsel %vm395, 0.0, 1.0
        %v398 = vlaneseq
        %v399 = vshrl.u32 %v398, 7
        %v400 = vsub.s32 0, %v399
        %v401 = vrot.slane %v396, %v400
        %v403 = vsel %vm394, %v393, %v401
        %v404 = vmul.f32 %v403, %v382
        %v406 = vlaneseq
        %v407 = vshrl.u32 %v406, 7
        %v408 = vsub.s32 0, %v407
        %v409 = vrot.slane %v364, %v408
        %v411 = vmul.f32 %v404, %v409
        %v412 = vmul.f32 %v411, %v363
        %v413 = vrot.slane %v412, 4
        %v414 = vadd.f32 %v412, %v413
        %v415 = vrot.slane %v414, 2
        %v416 = vadd.f32 %v414, %v415
        %v417 = vrot.slane %v416, 1
        %v418 = vadd.f32 %v416, %v417
        %419 = vst [vmem:[%s354] sm:$0x1] %v418
        %s420 = sand.u32 %s183, 1
        %s421 = scalar_lea.sflag [#allocation4], %s420
        %s422 = sand.u32 %s183, 1
        %s423 = scalar_lea.vmem [#allocation8], %s422
        // Predicated region
        $region53: #{tpu_custom_call.1} parent=39 // pred_check
          %p424 = pneg %p193
        $region54: #{tpu_custom_call.1} parent=39 // pred_check_branch
          %426 = sbr.rel (%p424) target = $region56
        $region55: #{tpu_custom_call.1} parent=39 // pred_region
          %s428 = ssub.s32 16, 16
          %429 = vsyncadd %s421, %s428
          %s430 = sadd.s32 %s30, %s29
          %s431 = smul.addr %s430, 16
          %s432 = scalar_lea.hbm %s5, %s431
          %s434 = sshll.u32 %s423, 4
          %s435 = int_to_ptr.vmem [resolvable:$true] %s434
          %437 = dma.vmem_to_hbm [thread:$0]  %s435, 16, %s432, %s421
        $region56: #{tpu_custom_call.1} parent=39 // pred_fallthru
          _
      $region40: #{tpu_custom_call.1} parent=5 // pred_fallthru
        _
      %p438 = scmp.le.s32.totalorder 2, %s20
      // Predicated region
      $region57: #{tpu_custom_call.1} parent=5 // pred_check
        %p439 = pneg %p438
      $region58: #{tpu_custom_call.1} parent=5 // pred_check_branch
        %441 = sbr.rel (%p439) target = $region60
      $region59: #{tpu_custom_call.1} parent=5 // pred_region
        %s442 = ssub.s32 %s20, 2
        // Predicated region
        $region61: #{tpu_custom_call.1} parent=59 // pred_check
          %p443 = pneg %p199
        $region62: #{tpu_custom_call.1} parent=59 // pred_check_branch
          %445 = sbr.rel (%p443) target = $region64
        $region63: #{tpu_custom_call.1} parent=59 // pred_region
          %s446 = sand.u32 %s184, 1
          %s447 = scalar_lea.sflag [#allocation4], %s446
          %s448 = sand.u32 %s184, 1
          %s449 = scalar_lea.vmem [#allocation8], %s448
          %450 = dma.done %s447, 16
        $region64: #{tpu_custom_call.1} parent=59 // pred_fallthru
          _
      $region60: #{tpu_custom_call.1} parent=5 // pred_fallthru
        _
    $region6: #{tpu_custom_call.1} parent=1 // loop_footer
      %s24 = sadd.s32 1, %s20
    $region7: #{tpu_custom_call.1} parent=1 // loop_footer_branch
      %19 = sbr.rel target = $region3
    $region8: #{tpu_custom_call.1} parent=1 // loop_exit
      _
    %451 = vsyncpa [#allocation3], 1
    %s452 = scalar_lea.sflag [#allocation3], 1
    %453 = vsyncpa %s452, 1
    %454 = vsyncpa [#allocation6], 1
    %s455 = scalar_lea.sflag [#allocation6], 1
    %456 = vsyncpa %s455, 1
    %457 = vsyncpa [#allocation4], 1
    %s458 = scalar_lea.sflag [#allocation4], 1
    %459 = vsyncpa %s458, 1

</llo_original>
